<compile_context>
chip_gen: v7x
topology: tpu7x:2x2x1
jax: 0.10.0
libtpu: 0.0.40
codegen_flags: <defaults>
</compile_context>

<pallas_src>
import jax
import jax.numpy as jnp
from jax import lax
from jax.experimental import pallas as pl
from jax.experimental.pallas import tpu as pltpu


def _round_up(x, m):
    return ((x + m - 1) // m) * m


def _select_tiling(lanes):
    """Generation-aware (row_cap, vmem_limit_bytes)."""
    try:
        kind = jax.devices()[0].device_kind.lower()
    except Exception:
        kind = ""
    if ("v6" in kind) or ("v7" in kind) or ("tpu7" in kind) or ("7x" in kind):
        # Fast-HBM chips (v6e 1.4 TB/s, v7x 3.2 TB/s): 4 MiB-per-input tiles
        # amortize the ~0.35us per-step overhead.  2 inputs x 2 buffers x 4 MiB
        # = 16 MiB + intermediates -> 48 MiB budget fits v7x's 64 MiB physical
        # VMEM and v6e's 128 MiB.
        row_cap, vmem_limit = 2048, 48 * 1024 * 1024
    else:
        # v5e / unknown: stay inside the 16 MiB scoped-VMEM default.
        row_cap, vmem_limit = 1024, None
    # Keep tile byte-size roughly constant when a narrower lane width is used.
    return row_cap * (512 // lanes), vmem_limit


def _make_kernel(num_tiles, rows_in_last_tile, binary_targets):
    """rows_in_last_tile=None -> every tile is full (no tail masking needed)."""

    def band_sum(x):
        # (tile_rows, lanes) -> (8, lanes): rows split on sublane boundaries so
        # the reduction is pure VPU adds (no cross-lane XLU work).
        tr, lanes = x.shape
        return x.reshape(tr // 8, 8, lanes).sum(axis=0)

    def kernel(pred_ref, target_ref, out_ref):
        p = pred_ref[...].astype(jnp.float32)
        t = target_ref[...].astype(jnp.float32)

        if binary_targets:
            # Single-log fast path (only valid for t in {0,1}): halves EUP work.
            p_eff = jnp.where(t > 0.5, p, 1.0 - p)
            loss = jnp.maximum(jnp.log(p_eff), -100.0)
        else:
            # General (soft-label) path, torch clamped-log semantics.
            log_p = jnp.maximum(jnp.log(p), -100.0)
            log_1mp = jnp.maximum(jnp.log(1.0 - p), -100.0)
            # Un-negated BCE term; negate/divide once on the summed scalar.
            loss = log_1mp + t * (log_p - log_1mp)

        if rows_in_last_tile is None:
            out_ref[...] = band_sum(loss)
        else:
            j = pl.program_id(0)

            @pl.when(j != num_tiles - 1)
            def _():
                out_ref[...] = band_sum(loss)

            @pl.when(j == num_tiles - 1)
            def _():
                # Last block reads past the array end; mask the garbage rows
                # with a select (not a multiply: garbage may be NaN/Inf).
                ridx = lax.broadcasted_iota(jnp.int32, loss.shape, 0)
                out_ref[...] = band_sum(
                    jnp.where(ridx < rows_in_last_tile, loss, 0.0))

    return kernel


def bce_loss(pred, target, *, binary_targets=False):
    """Mean BCE loss (== torch.nn.BCELoss()(pred.view(B,-1), target.view(B,-1)))."""
    n = pred.size
    p_flat = pred.reshape(-1)
    t_flat = target.reshape(-1)

    itemsize = pred.dtype.itemsize
    sub = max(8, 32 // itemsize)        # sublane multiple: 8 f32, 16 bf16, 32 int8

    # Lane width so the bulk 2-D view is a free bitcast (no pad, no extra HBM pass).
    lanes = 0
    for cand in (512, 256, 128):
        if n % cand == 0 and n // cand >= sub:
            lanes = cand
            break
    if lanes == 0:
        lanes = 128                     # ragged / tiny: kernel on aligned prefix

    rows = n // lanes
    if rows < sub:
        rows = 0                        # too small for a tile -> all in JAX tail
    main = rows * lanes

    total = jnp.zeros((), jnp.float32)

    if main > 0:
        row_cap, vmem_limit = _select_tiling(lanes)

        num_tiles = pl.cdiv(rows, row_cap)
        if num_tiles < 2 and rows >= 2 * sub:
            num_tiles = 2               # keep both TensorCores busy (megacore)
        tile_rows = _round_up(pl.cdiv(rows, num_tiles), sub)
        tile_rows = min(tile_rows, (rows // sub) * sub)   # block never exceeds array
        num_tiles = pl.cdiv(rows, tile_rows)

        rows_in_last_tile = None
        if num_tiles * tile_rows != rows:
            rows_in_last_tile = rows - (num_tiles - 1) * tile_rows

        p2 = (p_flat if main == n else p_flat[:main]).reshape(rows, lanes)
        t2 = (t_flat if main == n else t_flat[:main]).reshape(rows, lanes)

        partials = pl.pallas_call(
            _make_kernel(num_tiles, rows_in_last_tile, binary_targets),
            out_shape=jax.ShapeDtypeStruct((num_tiles * 8, lanes), jnp.float32),
            grid_spec=pltpu.PrefetchScalarGridSpec(
                num_scalar_prefetch=0,
                grid=(num_tiles,),
                in_specs=[
                    pl.BlockSpec((tile_rows, lanes), lambda j: (j, 0)),
                    pl.BlockSpec((tile_rows, lanes), lambda j: (j, 0)),
                ],
                out_specs=pl.BlockSpec((8, lanes), lambda j: (j, 0)),
            ),
            compiler_params=pltpu.CompilerParams(
                dimension_semantics=("parallel",),
                vmem_limit_bytes=vmem_limit,
            ),
        )(p2, t2)
        total = total + jnp.sum(partials)

    if main < n:
        # Ragged tail (< 128 elems) or tiny input: plain JAX, negligible cost.
        p_tail = p_flat[main:].astype(jnp.float32)
        t_tail = t_flat[main:].astype(jnp.float32)
        lp = jnp.maximum(jnp.log(p_tail), -100.0)
        l1p = jnp.maximum(jnp.log(1.0 - p_tail), -100.0)
        total = total + jnp.sum(l1p + t_tail * (lp - l1p))

    # Single negate + divide on the reduced scalar (removed from the kernel).
    return -total / jnp.float32(n)


if __name__ == "__main__":
    key = jax.random.PRNGKey(0)
    k1, k2, k3, k4 = jax.random.split(key, 4)

    def ref_bce(p, t):
        lp = jnp.maximum(jnp.log(p), -100.0)
        l1p = jnp.maximum(jnp.log(1.0 - p), -100.0)
        return jnp.mean(-(t * lp + (1.0 - t) * l1p))

    # NCHW-style inputs consistent with the module: batch=2, channels=4, 16x16.
    pred = jax.nn.sigmoid(jax.random.normal(k1, (2, 4, 16, 16), jnp.float32))
    target = (jax.random.uniform(k2, (2, 4, 16, 16)) > 0.5).astype(jnp.float32)

    loss = jax.jit(bce_loss)(pred, target)
    jax.block_until_ready(loss)
    assert jnp.allclose(loss, ref_bce(pred, target), rtol=1e-5, atol=1e-5), loss

    # Binary-target fast path (single log per element) — same result on 0/1 labels.
    loss_bin = jax.jit(lambda p, t: bce_loss(p, t, binary_targets=True))(pred, target)
    jax.block_until_ready(loss_bin)
    assert jnp.allclose(loss_bin, ref_bce(pred, target), rtol=1e-5, atol=1e-5), loss_bin

    # Ragged shape exercises the in-kernel tail mask + plain-JAX tail (no jnp.pad).
    pred2 = jax.nn.sigmoid(jax.random.normal(k3, (3, 5, 7, 11), jnp.float32))
    target2 = (jax.random.uniform(k4, (3, 5, 7, 11)) > 0.5).astype(jnp.float32)
    loss2 = jax.jit(bce_loss)(pred2, target2)
    jax.block_until_ready(loss2)
    assert jnp.allclose(loss2, ref_bce(pred2, target2), rtol=1e-5, atol=1e-5), loss2

    print("KERNEL_OK")
</pallas_src>

<mosaic_0001>
module attributes {stable_mosaic.version = 11 : i64} {
  func.func @kernel(%arg0: i32, %arg1: memref<8x256xf32, #tpu.memory_space<vmem>>, %arg2: memref<8x256xf32, #tpu.memory_space<vmem>>, %arg3: memref<8x256xf32, #tpu.memory_space<vmem>>) attributes {dimension_semantics = [#tpu.dimension_semantics<parallel>], iteration_bounds = array<i64: 1>, scalar_prefetch = 0 : i64, scratch_operands = 0 : i64, tpu.core_type = #tpu.core_type<tc>, window_params = [{transform_indices = @transform_0, window_bounds = array<i64: 8, 256>}, {transform_indices = @transform_1, window_bounds = array<i64: 8, 256>}, {transform_indices = @transform_2, window_bounds = array<i64: 8, 256>}]} {
    %c0 = arith.constant 0 : index
    %c0_0 = arith.constant 0 : index
    %0 = vector.load %arg1[%c0, %c0_0] : memref<8x256xf32, #tpu.memory_space<vmem>>, vector<8x256xf32>
    %c0_1 = arith.constant 0 : index
    %c0_2 = arith.constant 0 : index
    %1 = vector.load %arg2[%c0_1, %c0_2] : memref<8x256xf32, #tpu.memory_space<vmem>>, vector<8x256xf32>
    %2 = math.log %0 : vector<8x256xf32>
    %cst = arith.constant -1.000000e+02 : f32
    %3 = vector.broadcast %cst : f32 to vector<8x256xf32>
    %4 = arith.maximumf %2, %3 : vector<8x256xf32>
    %cst_3 = arith.constant 1.000000e+00 : f32
    %5 = vector.broadcast %cst_3 : f32 to vector<8x256xf32>
    %6 = arith.subf %5, %0 : vector<8x256xf32>
    %7 = math.log %6 : vector<8x256xf32>
    %cst_4 = arith.constant -1.000000e+02 : f32
    %8 = vector.broadcast %cst_4 : f32 to vector<8x256xf32>
    %9 = arith.maximumf %7, %8 : vector<8x256xf32>
    %10 = arith.subf %4, %9 : vector<8x256xf32>
    %11 = arith.mulf %1, %10 : vector<8x256xf32>
    %12 = arith.addf %9, %11 : vector<8x256xf32>
    %13 = vector.shape_cast %12 : vector<8x256xf32> to vector<1x8x256xf32>
    %cst_5 = arith.constant dense<0.000000e+00> : vector<8x256xf32>
    %14 = vector.multi_reduction <add>, %13, %cst_5 [0] : vector<1x8x256xf32> to vector<8x256xf32>
    %c0_6 = arith.constant 0 : index
    %c0_7 = arith.constant 0 : index
    %15 = vector.load %arg3[%c0_6, %c0_7] : memref<8x256xf32, #tpu.memory_space<vmem>>, vector<8x256xf32>
    tpu.vector_store %arg3[%c0_6, %c0_7], %14 {strides = array<i32>} : memref<8x256xf32, #tpu.memory_space<vmem>>, vector<8x256xf32>,
    return
  }
  func.func @transform_0(%arg0: i32) -> (i32, i32) {
    %c0_i32 = arith.constant 0 : i32
    %c0_i32_0 = arith.constant 0 : i32
    return %arg0, %c0_i32 : i32, i32
  }
  func.func @transform_1(%arg0: i32) -> (i32, i32) {
    %c0_i32 = arith.constant 0 : i32
    %c0_i32_0 = arith.constant 0 : i32
    return %arg0, %c0_i32 : i32, i32
  }
  func.func @transform_2(%arg0: i32) -> (i32, i32) {
    %c0_i32 = arith.constant 0 : i32
    %c0_i32_0 = arith.constant 0 : i32
    return %arg0, %c0_i32 : i32, i32
  }
}

</mosaic_0001>

<llo_original>
// kernel: bce_loss.1
$region0: #{bce_loss.1}
  #allocation0 [shape = 'u32[]', space=smem, size = 0x4, offset = 0x4, fixed_abs, tag = 'smem constant byte address 0x4 - core index']
  #allocation1 [shape = 'u32[144,128]{1,0:T(1,128)}', space=vmem, size = 0x12000, scoped, tag = 'internal scratch']
  %s0 = inlined_call_operand.vmem [shape: f32[8,256], index: 0, kind: input, shape index: {}]
  %s1 = inlined_call_operand.vmem [shape: f32[8,256], index: 1, kind: input, shape index: {}]
  %s2 = inlined_call_operand.vmem [shape: f32[8,256], index: 2, kind: output, shape index: {}]
  %s3 = sld [smem:[#allocation0]]
  $region18: #{bce_loss.1} parent=0
    _
  %s5 = ssub.s32 1, %s3
  %s6 = scalar_select 0, %s5, %s3
  // Predicated region
  $region2: #{bce_loss.1} parent=0 // pred_check
    _
  $region3: #{bce_loss.1} parent=0 // pred_check_branch
    %8 = sbr.rel (0) target = $region5
  $region4: #{bce_loss.1} parent=0 // pred_region
    _
  $region5: #{bce_loss.1} parent=0 // pred_fallthru
    _
  // Predicated region
  $region6: #{bce_loss.1} parent=0 // pred_check
    _
  $region7: #{bce_loss.1} parent=0 // pred_check_branch
    %10 = sbr.rel (0) target = $region9
  $region8: #{bce_loss.1} parent=0 // pred_region
    _
  $region9: #{bce_loss.1} parent=0 // pred_fallthru
    _
  %v11 = vld [vmem:[%s0] sm:$0xff]
  %v12 = vld [vmem:[%s0 + $0x8] sm:$0xff]
  %v13 = vld [vmem:[%s1] sm:$0xff]
  %v14 = vld [vmem:[%s1 + $0x8] sm:$0xff]
  %v15 = vlog2.pop %v11
  %v16 = vmul.f32 %v15, 0.6931472
  %v17 = vlog2.pop %v12
  %v18 = vmul.f32 %v17, 0.6931472
  %v19 = vmax.f32 %v16, -100.0
  %v20 = vmax.f32 %v18, -100.0
  %v21 = vsub.f32 1.0, %v11
  %v22 = vsub.f32 1.0, %v12
  %v23 = vlog2.pop %v21
  %v24 = vmul.f32 %v23, 0.6931472
  %v25 = vlog2.pop %v22
  %v26 = vmul.f32 %v25, 0.6931472
  %v27 = vmax.f32 %v24, -100.0
  %v28 = vmax.f32 %v26, -100.0
  %v29 = vsub.f32 %v19, %v27
  %v30 = vsub.f32 %v20, %v28
  %v31 = vmul.f32 %v13, %v29
  %v32 = vmul.f32 %v14, %v30
  %v33 = vadd.f32 %v27, %v31
  %v34 = vadd.f32 %v28, %v32
  %v35 = vadd.f32 %v33, 0.0
  %v36 = vadd.f32 %v34, 0.0
  %37 = vst [vmem:[%s2] sm:$0xff] %v35
  %38 = vst [vmem:[%s2 + $0x8] sm:$0xff] %v36
  // Predicated region
  $region10: #{bce_loss.1} parent=0 // pred_check
    _
  $region11: #{bce_loss.1} parent=0 // pred_check_branch
    %40 = sbr.rel (0) target = $region13
  $region12: #{bce_loss.1} parent=0 // pred_region
    _
  $region13: #{bce_loss.1} parent=0 // pred_fallthru
    _
  // Predicated region
  $region14: #{bce_loss.1} parent=0 // pred_check
    _
  $region15: #{bce_loss.1} parent=0 // pred_check_branch
    %42 = sbr.rel (0) target = $region17
  $region16: #{bce_loss.1} parent=0 // pred_region
    _
  $region17: #{bce_loss.1} parent=0 // pred_fallthru
    _

</llo_original>
